<compile_context>
chip_gen: v6e
topology: v6e:2x2x1
jax: 0.10.0
libtpu: 0.0.40
codegen_flags: <defaults>
</compile_context>

<pallas_src>
import functools

import jax
import jax.numpy as jnp
import numpy as np
from jax.experimental import pallas as pl
from jax.experimental.pallas import tpu as pltpu

LANES = 128        # padded feature width for hidden activations (lane-dense)
SUBLANE = 8        # f32 sublane granularity
TB_ALIGN = 16      # batch-tile alignment (covers f32 and bf16 outputs)


def _round_up(n, m):
    return ((n + m - 1) // m) * m


def _is_bf16(dtype):
    return np.dtype(dtype) == np.dtype(jnp.bfloat16)


def _num_tensorcores():
    """2 TensorCores on v7x, 1 on v5e/v6e (best-effort detection)."""
    try:
        kind = getattr(jax.devices()[0], "device_kind", "").lower()
        if "v7" in kind or "7x" in kind:
            return 2
    except Exception:
        pass
    return 1


# ----------------------------------------------------------------------------
# Packed-parameter slab layout (all offsets sublane-aligned for the slab dtype)
#   rows [0, k1)                    : W1 (zero-padded)   [nb_obs, 32]
#   rows [k1, k1+128)               : W2 (zero-padded)   [32, 32]
#   rows [k1+128, k1+256)           : W3 (zero-padded)   [32, nb_actions]
#   rows [k1+256, ...)              : b1 / b2 / b3, each in its own aligned
#                                     sub-row block (8 rows f32 / 16 rows bf16)
# ----------------------------------------------------------------------------
def _slab_layout(nb_observations, dtype):
    sub = 16 if _is_bf16(dtype) else SUBLANE
    k1 = _round_up(max(nb_observations, 1), sub)
    off_w2 = k1
    off_w3 = k1 + LANES
    off_b = k1 + 2 * LANES
    rows = off_b + 3 * sub
    return {"sub": sub, "k1": k1, "off_w2": off_w2, "off_w3": off_w3,
            "off_b": off_b, "rows": rows}


def pack_params(params, nb_observations, nb_actions, hidden=32,
                dtype=jnp.float32):
    assert hidden <= LANES and nb_actions <= LANES
    w1, b1, w2, b2, w3, b3 = params
    lay = _slab_layout(nb_observations, dtype)
    slab = jnp.zeros((lay["rows"], LANES), jnp.float32)
    slab = slab.at[:nb_observations, :hidden].set(w1)
    slab = slab.at[lay["off_w2"]:lay["off_w2"] + hidden, :hidden].set(w2)
    slab = slab.at[lay["off_w3"]:lay["off_w3"] + hidden, :nb_actions].set(w3)
    ob, s = lay["off_b"], lay["sub"]
    slab = slab.at[ob + 0 * s, :hidden].set(b1.reshape(-1))
    slab = slab.at[ob + 1 * s, :hidden].set(b2.reshape(-1))
    slab = slab.at[ob + 2 * s, :nb_actions].set(b3.reshape(-1))
    return slab.astype(dtype)


# ----------------------------------------------------------------------------
# Kernel: fused 3-layer MLP in 128-lane padded feature space.  Padded slab
# rows/columns are zero, so padded hidden lanes stay exactly zero through the
# ReLUs.  Only the first nb_actions lanes of the result are stored.
# ----------------------------------------------------------------------------
def _qnet_kernel(x_ref, p_ref, o_ref, *, K, off_w2, off_w3, off_b,
                 bias_stride, nb_actions, compute_dtype):
    f32 = jnp.float32
    cd = compute_dtype

    w1 = p_ref[0:K, :]                              # [K, 128]   (aligned)
    w2 = p_ref[off_w2:off_w2 + LANES, :]            # [128, 128] (aligned)
    w3 = p_ref[off_w3:off_w3 + LANES, :]            # [128, 128] (aligned)
    b1 = p_ref[off_b:off_b + 1, :]                  # each bias row starts at
    b2 = p_ref[off_b + bias_stride:off_b + bias_stride + 1, :]      # a sublane-
    b3 = p_ref[off_b + 2 * bias_stride:off_b + 2 * bias_stride + 1, :]  # aligned row

    x = x_ref[...].astype(cd)                       # [TB, K]

    h1 = jnp.dot(x, w1, preferred_element_type=f32) + b1.astype(f32)
    h1 = jnp.maximum(h1, 0.0)

    h2 = jnp.dot(h1.astype(cd), w2, preferred_element_type=f32) + b2.astype(f32)
    h2 = jnp.maximum(h2, 0.0)

    out = jnp.dot(h2.astype(cd), w3, preferred_element_type=f32) + b3.astype(f32)

    # Narrow store: only the useful nb_actions lanes leave the kernel.
    o_ref[...] = out[:, :nb_actions].astype(o_ref.dtype)


# ----------------------------------------------------------------------------
# Forward wrapper.
# ----------------------------------------------------------------------------
def qnet_forward(x, packed_params, nb_actions, *, batch_tile=4096,
                 small_batch_threshold=None, out_dtype=jnp.float32):
    """x: [B, nb_observations] f32 -> [B, nb_actions] (out_dtype)."""
    B, F = x.shape
    lay = _slab_layout(F, packed_params.dtype)
    assert packed_params.shape == (lay["rows"], LANES), "slab/layout mismatch"
    compute_dtype = jnp.bfloat16 if _is_bf16(packed_params.dtype) else jnp.float32

    # Pad the (tiny) feature axis only if nb_observations is not sublane
    # aligned for the slab dtype; the big batch/lane dims are never padded.
    K = lay["k1"]
    if F != K:
        x = jnp.pad(x, ((0, 0), (0, K - F)))

    kern = functools.partial(
        _qnet_kernel, K=K, off_w2=lay["off_w2"], off_w3=lay["off_w3"],
        off_b=lay["off_b"], bias_stride=lay["sub"], nb_actions=nb_actions,
        compute_dtype=compute_dtype)

    cores = _num_tensorcores()
    if small_batch_threshold is None:
        # v5e/v6e: one TC -> grid steps are pure overhead, stay resident long.
        # v7x: two TCs -> switch to the parallel grid early so both get work.
        small_batch_threshold = 256 if cores >= 2 else 4096

    if B <= small_batch_threshold:
        # Gridless call: everything resident in VMEM, single DMA per operand,
        # no per-step pipeline bookkeeping, narrow (B, nb_actions) output.
        return pl.pallas_call(
            kern,
            out_shape=jax.ShapeDtypeStruct((B, nb_actions), out_dtype),
            in_specs=[
                pl.BlockSpec(memory_space=pltpu.MemorySpace.VMEM),
                pl.BlockSpec(memory_space=pltpu.MemorySpace.VMEM),
            ],
            out_specs=pl.BlockSpec(memory_space=pltpu.MemorySpace.VMEM),
        )(x, packed_params)

    # Batch-tiled path: big batch tiles (amortize ~0.35us/step overhead),
    # weight slab VMEM-resident (index_map -> (0,0)), parallel batch axis so
    # v7x's two TensorCores split the grid.  Cap the tile at ceil(B/cores) so
    # every core gets at least one step.
    per_core = -(-B // cores)
    tb = max(TB_ALIGN, min(batch_tile, _round_up(per_core, TB_ALIGN)))
    bp = _round_up(B, tb)
    xg = x if bp == B else jnp.pad(x, ((0, bp - B), (0, 0)))  # ragged fallback only

    out = pl.pallas_call(
        kern,
        out_shape=jax.ShapeDtypeStruct((bp, nb_actions), out_dtype),
        grid=(bp // tb,),
        in_specs=[
            pl.BlockSpec((tb, K), lambda i: (i, 0)),
            pl.BlockSpec(packed_params.shape, lambda i: (0, 0)),
        ],
        out_specs=pl.BlockSpec((tb, nb_actions), lambda i: (i, 0)),
        compiler_params=pltpu.CompilerParams(
            dimension_semantics=("parallel",)),
    )(xg, packed_params)
    return out if bp == B else out[:B]


# ----------------------------------------------------------------------------
# Init mimicking PyTorch nn.Linear default U(-1/sqrt(fan_in), 1/sqrt(fan_in)),
# stored as [in, out] so the kernel computes x @ W + b.
# ----------------------------------------------------------------------------
def init_params(key, nb_observations, nb_actions, hidden=32):
    keys = jax.random.split(key, 6)

    def linear(kw, kb, fan_in, fan_out):
        bound = 1.0 / np.sqrt(fan_in)
        w = jax.random.uniform(kw, (fan_in, fan_out), jnp.float32, -bound, bound)
        b = jax.random.uniform(kb, (1, fan_out), jnp.float32, -bound, bound)
        return w, b

    w1, b1 = linear(keys[0], keys[1], nb_observations, hidden)
    w2, b2 = linear(keys[2], keys[3], hidden, hidden)
    w3, b3 = linear(keys[4], keys[5], hidden, nb_actions)
    return (w1, b1, w2, b2, w3, b3)


def qnet_ref(x, params):
    w1, b1, w2, b2, w3, b3 = params
    h1 = jnp.maximum(x @ w1 + b1, 0.0)
    h2 = jnp.maximum(h1 @ w2 + b2, 0.0)
    return h2 @ w3 + b3


if __name__ == "__main__":
    nb_observations = 8
    nb_actions = 4
    hidden = 32

    key = jax.random.PRNGKey(0)
    kp, kx1, kx2, kx3 = jax.random.split(key, 4)
    params = init_params(kp, nb_observations, nb_actions, hidden)
    slab_f32 = pack_params(params, nb_observations, nb_actions, hidden)

    # 1) Small batch -> gridless, all-resident kernel (f32), narrow output.
    x_small = jax.random.normal(kx1, (8, nb_observations), jnp.float32)
    out_small = jax.block_until_ready(qnet_forward(x_small, slab_f32, nb_actions))
    np.testing.assert_allclose(np.asarray(out_small),
                               np.asarray(qnet_ref(x_small, params)),
                               rtol=1e-4, atol=1e-4)

    # 2) Larger batch, force the batch-tiled grid path (weights resident,
    #    parallel batch axis, narrow (B, nb_actions) output).
    x_big = jax.random.normal(kx2, (1024, nb_observations), jnp.float32)
    out_big = jax.block_until_ready(
        qnet_forward(x_big, slab_f32, nb_actions, small_batch_threshold=0))
    np.testing.assert_allclose(np.asarray(out_big),
                               np.asarray(qnet_ref(x_big, params)),
                               rtol=1e-4, atol=1e-4)

    # 3) Ragged batch exercises the pad-fallback + row-slice path.
    x_rag = jax.random.normal(kx3, (1000, nb_observations), jnp.float32)
    out_rag = jax.block_until_ready(
        qnet_forward(x_rag, slab_f32, nb_actions, small_batch_threshold=0,
                     batch_tile=256))
    np.testing.assert_allclose(np.asarray(out_rag),
                               np.asarray(qnet_ref(x_rag, params)),
                               rtol=1e-4, atol=1e-4)

    # 4) bf16 slab packed host-side (halves weight DMA, no per-step re-cast)
    #    + bf16 output stream (halves the dominant HBM writeback), f32 accum.
    slab_bf16 = pack_params(params, nb_observations, nb_actions, hidden,
                            dtype=jnp.bfloat16)
    out_bf16 = jax.block_until_ready(
        qnet_forward(x_big, slab_bf16, nb_actions, small_batch_threshold=0,
                     out_dtype=jnp.bfloat16))
    np.testing.assert_allclose(np.asarray(out_bf16.astype(jnp.float32)),
                               np.asarray(qnet_ref(x_big, params)),
                               rtol=5e-2, atol=5e-2)

    print("KERNEL_OK")
</pallas_src>

<mosaic_0001>
module attributes {stable_mosaic.version = 11 : i64} {
  func.func @_qnet_kernel(%arg0: memref<8x8xf32, #tpu.memory_space<vmem>>, %arg1: memref<288x128xf32, #tpu.memory_space<vmem>>, %arg2: memref<8x4xf32, #tpu.memory_space<vmem>>) attributes {dimension_semantics = [], scalar_prefetch = 0 : i64, scratch_operands = 0 : i64, tpu.core_type = #tpu.core_type<tc>} {
    %c0 = arith.constant 0 : index
    %c0_0 = arith.constant 0 : index
    %0 = vector.load %arg1[%c0, %c0_0] : memref<288x128xf32, #tpu.memory_space<vmem>>, vector<8x128xf32>
    %c8 = arith.constant 8 : index
    %c0_1 = arith.constant 0 : index
    %1 = vector.load %arg1[%c8, %c0_1] : memref<288x128xf32, #tpu.memory_space<vmem>>, vector<128x128xf32>
    %c136 = arith.constant 136 : index
    %c0_2 = arith.constant 0 : index
    %2 = vector.load %arg1[%c136, %c0_2] : memref<288x128xf32, #tpu.memory_space<vmem>>, vector<128x128xf32>
    %c264 = arith.constant 264 : index
    %c0_3 = arith.constant 0 : index
    %3 = vector.load %arg1[%c264, %c0_3] : memref<288x128xf32, #tpu.memory_space<vmem>>, vector<1x128xf32>
    %c272 = arith.constant 272 : index
    %c0_4 = arith.constant 0 : index
    %4 = vector.load %arg1[%c272, %c0_4] : memref<288x128xf32, #tpu.memory_space<vmem>>, vector<1x128xf32>
    %c280 = arith.constant 280 : index
    %c0_5 = arith.constant 0 : index
    %5 = vector.load %arg1[%c280, %c0_5] : memref<288x128xf32, #tpu.memory_space<vmem>>, vector<1x128xf32>
    %c0_6 = arith.constant 0 : index
    %c0_7 = arith.constant 0 : index
    %6 = vector.load %arg0[%c0_6, %c0_7] : memref<8x8xf32, #tpu.memory_space<vmem>>, vector<8x8xf32>
    %cst = arith.constant dense<0.000000e+00> : vector<8x128xf32>
    %7 = tpu.matmul %6, %0, %cst {dimension_numbers = #tpu.dot_dimension_numbers<[1], [0], [0], [1], [0, 0, 1, 1], [], []>} : vector<8x8xf32>, vector<8x128xf32>, vector<8x128xf32> -> vector<8x128xf32>
    %8 = vector.broadcast %3 : vector<1x128xf32> to vector<8x128xf32>
    %9 = arith.addf %7, %8 : vector<8x128xf32>
    %cst_8 = arith.constant 0.000000e+00 : f32
    %10 = vector.broadcast %cst_8 : f32 to vector<8x128xf32>
    %11 = arith.maximumf %9, %10 : vector<8x128xf32>
    %cst_9 = arith.constant dense<0.000000e+00> : vector<8x128xf32>
    %12 = tpu.matmul %11, %1, %cst_9 {dimension_numbers = #tpu.dot_dimension_numbers<[1], [0], [0], [1], [0, 0, 1, 1], [], []>} : vector<8x128xf32>, vector<128x128xf32>, vector<8x128xf32> -> vector<8x128xf32>
    %13 = vector.broadcast %4 : vector<1x128xf32> to vector<8x128xf32>
    %14 = arith.addf %12, %13 : vector<8x128xf32>
    %cst_10 = arith.constant 0.000000e+00 : f32
    %15 = vector.broadcast %cst_10 : f32 to vector<8x128xf32>
    %16 = arith.maximumf %14, %15 : vector<8x128xf32>
    %cst_11 = arith.constant dense<0.000000e+00> : vector<8x128xf32>
    %17 = tpu.matmul %16, %2, %cst_11 {dimension_numbers = #tpu.dot_dimension_numbers<[1], [0], [0], [1], [0, 0, 1, 1], [], []>} : vector<8x128xf32>, vector<128x128xf32>, vector<8x128xf32> -> vector<8x128xf32>
    %18 = vector.broadcast %5 : vector<1x128xf32> to vector<8x128xf32>
    %19 = arith.addf %17, %18 : vector<8x128xf32>
    %20 = vector.extract_strided_slice %19 {offsets = [0, 0], sizes = [8, 4], strides = [1, 1]} : vector<8x128xf32> to vector<8x4xf32>
    %c0_12 = arith.constant 0 : index
    %c0_13 = arith.constant 0 : index
    %21 = vector.load %arg2[%c0_12, %c0_13] : memref<8x4xf32, #tpu.memory_space<vmem>>, vector<8x4xf32>
    tpu.vector_store %arg2[%c0_12, %c0_13], %20 {strides = array<i32>} : memref<8x4xf32, #tpu.memory_space<vmem>>, vector<8x4xf32>,
    return
  }
}

</mosaic_0001>

<llo_original>
// kernel: tpu_custom_call.1
$region0: #{tpu_custom_call.1}
  #allocation0 [shape = 'u32[]', space=smem, size = 0x4, offset = 0x4, fixed_abs, tag = 'smem constant byte address 0x4 - core index']
  #allocation1 [shape = 'u32[144,128]{1,0:T(1,128)}', space=vmem, size = 0x12000, scoped, tag = 'internal scratch']
  %s0 = inlined_call_operand.hbm [shape: f32[8,8], index: 0, kind: input, shape index: {}]
  %s1 = inlined_call_operand.hbm [shape: f32[288,128], index: 1, kind: input, shape index: {}]
  %s2 = inlined_call_operand.vmem [shape: f32[8,4], index: 2, kind: output, shape index: {}]
  %s3 = sld [smem:[#allocation0]]
  $region26: #{tpu_custom_call.1} parent=0
    _
  %s5 = ssub.s32 1, %s3
  %s6 = scalar_select 0, %s5, %s3
  $region1: #{tpu_custom_call.1} parent=0
    #allocation2 [shape = 'u8[4096]{0}', space=vmem, size = 0x1000, scoped, tag = 'input window, operand 0, single buffered']
    #allocation3 [shape = 's32[1]{0}', space=sflag, size = 0x4, scoped, tag = 'scoped memory for tpu_custom_call.1']
    #allocation4 [shape = 'u8[147456]{0}', space=vmem, size = 0x24000, scoped, tag = 'input window, operand 1, single buffered']
    #allocation5 [shape = 's32[1]{0}', space=sflag, size = 0x4, scoped, tag = 'scoped memory for tpu_custom_call.1']
    %7 = vsyncpa [#allocation3], 0
    %8 = vsyncpa [#allocation5], 0
    // Predicated region
    $region2: #{tpu_custom_call.1} parent=1 // pred_check
      _
    $region3: #{tpu_custom_call.1} parent=1 // pred_check_branch
      %10 = sbr.rel (0) target = $region5
    $region4: #{tpu_custom_call.1} parent=1 // pred_region
      %s12 = ssub.s32 128, 128
      %13 = vsyncadd [#allocation3], %s12
      %s15 = sshll.u32 [#allocation2], 4
      %s16 = int_to_ptr.vmem [resolvable:$true] %s15
      %18 = dma.hbm_to_vmem [thread:$0]  %s0, 128, %s16, [#allocation3]
    $region5: #{tpu_custom_call.1} parent=1 // pred_fallthru
      _
    // Predicated region
    $region6: #{tpu_custom_call.1} parent=1 // pred_check
      _
    $region7: #{tpu_custom_call.1} parent=1 // pred_check_branch
      %20 = sbr.rel (0) target = $region9
    $region8: #{tpu_custom_call.1} parent=1 // pred_region
      %s22 = ssub.s32 4608, 4608
      %23 = vsyncadd [#allocation5], %s22
      %s24 = sshll.u32 [#allocation4], 4
      %s25 = int_to_ptr.vmem [resolvable:$true] %s24
      %30 = dma.hbm_to_vmem [thread:$0]  %s1, 4608, %s25, [#allocation5], 128, 128, 8
    $region9: #{tpu_custom_call.1} parent=1 // pred_fallthru
      _
    // Predicated region
    $region10: #{tpu_custom_call.1} parent=1 // pred_check
      _
    $region11: #{tpu_custom_call.1} parent=1 // pred_check_branch
      %32 = sbr.rel (0) target = $region13
    $region12: #{tpu_custom_call.1} parent=1 // pred_region
      %33 = dma.done [#allocation3], 128
    $region13: #{tpu_custom_call.1} parent=1 // pred_fallthru
      _
    // Predicated region
    $region14: #{tpu_custom_call.1} parent=1 // pred_check
      _
    $region15: #{tpu_custom_call.1} parent=1 // pred_check_branch
      %35 = sbr.rel (0) target = $region17
    $region16: #{tpu_custom_call.1} parent=1 // pred_region
      %36 = dma.done [#allocation5], 4608
    $region17: #{tpu_custom_call.1} parent=1 // pred_fallthru
      _
    %v37 = vld [vmem:[#allocation4] sm:$0xff]
    %v38 = vld [vmem:[#allocation4 + $0x8] sm:$0xff]
    %v39 = vld [vmem:[#allocation4 + $0x10] sm:$0xff]
    %v40 = vld [vmem:[#allocation4 + $0x18] sm:$0xff]
    %v41 = vld [vmem:[#allocation4 + $0x20] sm:$0xff]
    %v42 = vld [vmem:[#allocation4 + $0x28] sm:$0xff]
    %v43 = vld [vmem:[#allocation4 + $0x30] sm:$0xff]
    %v44 = vld [vmem:[#allocation4 + $0x38] sm:$0xff]
    %v45 = vld [vmem:[#allocation4 + $0x40] sm:$0xff]
    %v46 = vld [vmem:[#allocation4 + $0x48] sm:$0xff]
    %v47 = vld [vmem:[#allocation4 + $0x50] sm:$0xff]
    %v48 = vld [vmem:[#allocation4 + $0x58] sm:$0xff]
    %v49 = vld [vmem:[#allocation4 + $0x60] sm:$0xff]
    %v50 = vld [vmem:[#allocation4 + $0x68] sm:$0xff]
    %v51 = vld [vmem:[#allocation4 + $0x70] sm:$0xff]
    %v52 = vld [vmem:[#allocation4 + $0x78] sm:$0xff]
    %v53 = vld [vmem:[#allocation4 + $0x80] sm:$0xff]
    %v54 = vld [vmem:[#allocation4 + $0x88] sm:$0xff]
    %v55 = vld [vmem:[#allocation4 + $0x90] sm:$0xff]
    %v56 = vld [vmem:[#allocation4 + $0x98] sm:$0xff]
    %v57 = vld [vmem:[#allocation4 + $0xa0] sm:$0xff]
    %v58 = vld [vmem:[#allocation4 + $0xa8] sm:$0xff]
    %v59 = vld [vmem:[#allocation4 + $0xb0] sm:$0xff]
    %v60 = vld [vmem:[#allocation4 + $0xb8] sm:$0xff]
    %v61 = vld [vmem:[#allocation4 + $0xc0] sm:$0xff]
    %v62 = vld [vmem:[#allocation4 + $0xc8] sm:$0xff]
    %v63 = vld [vmem:[#allocation4 + $0xd0] sm:$0xff]
    %v64 = vld [vmem:[#allocation4 + $0xd8] sm:$0xff]
    %v65 = vld [vmem:[#allocation4 + $0xe0] sm:$0xff]
    %v66 = vld [vmem:[#allocation4 + $0xe8] sm:$0xff]
    %v67 = vld [vmem:[#allocation4 + $0xf0] sm:$0xff]
    %v68 = vld [vmem:[#allocation4 + $0xf8] sm:$0xff]
    %v69 = vld [vmem:[#allocation4 + $0x100] sm:$0xff]
    %v70 = vld [vmem:[#allocation4 + $0x108] sm:$0x1]
    %v71 = vld [vmem:[#allocation4 + $0x110] sm:$0x1]
    %v72 = vld [vmem:[#allocation4 + $0x118] sm:$0x1]
    %v73 = vld [vmem:[#allocation2] sm:$0xff]
    %v74 = vlaneseq
    %v75 = vshrl.u32 %v74, 7
    %v76 = vsub.s32 0, %v75
    %v77 = vrot.slane %v70, %v76
    %vm78 = vcmask 64512
    %v80 = vsel %vm78, %v73, 0
    %82 = vmatprep.subr.mxu0 0.0
    %83 = vmatpush1.msra.mxu0 0.0
    %84 = vmatprep.subr.mxu0 0.0
    %85 = vmatpush1.msra.mxu0 0.0
    %86 = vmatprep.subr.mxu0 0.0
    %87 = vmatpush1.msra.mxu0 0.0
    %88 = vmatprep.subr.mxu0 0.0
    %89 = vmatpush1.msra.mxu0 0.0
    %90 = vmatprep.subr.mxu0 0.0
    %91 = vmatpush1.msra.mxu0 0.0
    %92 = vmatprep.subr.mxu0 0.0
    %93 = vmatpush1.msra.mxu0 0.0
    %94 = vmatprep.subr.mxu0 0.0
    %95 = vmatpush1.msra.mxu0 0.0
    %96 = vmatprep.subr.mxu0 0.0
    %97 = vmatpush1.msra.mxu0 0.0
    %98 = vmatprep.subr.mxu0 0.0
    %99 = vmatpush1.msra.mxu0 0.0
    %100 = vmatprep.subr.mxu0 0.0
    %101 = vmatpush1.msra.mxu0 0.0
    %102 = vmatprep.subr.mxu0 0.0
    %103 = vmatpush1.msra.mxu0 0.0
    %104 = vmatprep.subr.mxu0 0.0
    %105 = vmatpush1.msra.mxu0 0.0
    %106 = vmatprep.subr.mxu0 0.0
    %107 = vmatpush1.msra.mxu0 0.0
    %108 = vmatprep.subr.mxu0 0.0
    %109 = vmatpush1.msra.mxu0 0.0
    %110 = vmatprep.subr.mxu0 0.0
    %111 = vmatpush1.msra.mxu0 0.0
    %112 = vmatprep.subr.mxu0 0.0
    %113 = vmatpush1.msra.mxu0 %v37
    %114 = vmatprep.subr.mxu0 0.0
    %115 = vmatpush2.msra.mxu0 0.0
    %116 = vmatprep.subr.mxu0 0.0
    %117 = vmatpush2.msra.mxu0 0.0
    %118 = vmatprep.subr.mxu0 0.0
    %119 = vmatpush2.msra.mxu0 0.0
    %120 = vmatprep.subr.mxu0 0.0
    %121 = vmatpush2.msra.mxu0 0.0
    %122 = vmatprep.subr.mxu0 0.0
    %123 = vmatpush2.msra.mxu0 0.0
    %124 = vmatprep.subr.mxu0 0.0
    %125 = vmatpush2.msra.mxu0 0.0
    %126 = vmatprep.subr.mxu0 0.0
    %127 = vmatpush2.msra.mxu0 0.0
    %128 = vmatprep.subr.mxu0 0.0
    %129 = vmatpush2.msra.mxu0 0.0
    %130 = vmatprep.subr.mxu0 0.0
    %131 = vmatpush2.msra.mxu0 0.0
    %132 = vmatprep.subr.mxu0 0.0
    %133 = vmatpush2.msra.mxu0 0.0
    %134 = vmatprep.subr.mxu0 0.0
    %135 = vmatpush2.msra.mxu0 0.0
    %136 = vmatprep.subr.mxu0 0.0
    %137 = vmatpush2.msra.mxu0 0.0
    %138 = vmatprep.subr.mxu0 0.0
    %139 = vmatpush2.msra.mxu0 0.0
    %140 = vmatprep.subr.mxu0 0.0
    %141 = vmatpush2.msra.mxu0 0.0
    %142 = vmatprep.subr.mxu0 0.0
    %143 = vmatpush2.msra.mxu0 0.0
    %144 = vmatprep.subr.mxu0 0.0
    %145 = vmatpush2.msra.mxu0 0.0
    %146 = vmatprep.mubr.f32.mxu0 0.0
    %147 = vmatmul.mubr.f32.gmra.mxu0 %v80
    %v148 = vpop.f32.mrf.mxu0
    %v149 = vadd.f32 %v77, %v148
    %v150 = vpop.f32.mrf.mxu0
    %151 = vdwg.mxu0
    %v152 = vmax.f32 %v149, 0.0
    %v153 = vlaneseq
    %v154 = vshrl.u32 %v153, 7
    %v155 = vsub.s32 0, %v154
    %v156 = vrot.slane %v71, %v155
    %157 = vmatprep.subr.mxu0 0.0
    %158 = vmatpush1.msra.mxu0 %v53
    %159 = vmatprep.subr.mxu0 0.0
    %160 = vmatpush1.msra.mxu0 %v52
    %161 = vmatprep.subr.mxu0 0.0
    %162 = vmatpush1.msra.mxu0 %v51
    %163 = vmatprep.subr.mxu0 0.0
    %164 = vmatpush1.msra.mxu0 %v50
    %165 = vmatprep.subr.mxu0 0.0
    %166 = vmatpush1.msra.mxu0 %v49
    %167 = vmatprep.subr.mxu0 0.0
    %168 = vmatpush1.msra.mxu0 %v48
    %169 = vmatprep.subr.mxu0 0.0
    %170 = vmatpush1.msra.mxu0 %v47
    %171 = vmatprep.subr.mxu0 0.0
    %172 = vmatpush1.msra.mxu0 %v46
    %173 = vmatprep.subr.mxu0 0.0
    %174 = vmatpush1.msra.mxu0 %v45
    %175 = vmatprep.subr.mxu0 0.0
    %176 = vmatpush1.msra.mxu0 %v44
    %177 = vmatprep.subr.mxu0 0.0
    %178 = vmatpush1.msra.mxu0 %v43
    %179 = vmatprep.subr.mxu0 0.0
    %180 = vmatpush1.msra.mxu0 %v42
    %181 = vmatprep.subr.mxu0 0.0
    %182 = vmatpush1.msra.mxu0 %v41
    %183 = vmatprep.subr.mxu0 0.0
    %184 = vmatpush1.msra.mxu0 %v40
    %185 = vmatprep.subr.mxu0 0.0
    %186 = vmatpush1.msra.mxu0 %v39
    %187 = vmatprep.subr.mxu0 0.0
    %188 = vmatpush1.msra.mxu0 %v38
    %189 = vmatprep.subr.mxu0 0.0
    %190 = vmatpush2.msra.mxu0 0.0
    %191 = vmatprep.subr.mxu0 0.0
    %192 = vmatpush2.msra.mxu0 0.0
    %193 = vmatprep.subr.mxu0 0.0
    %194 = vmatpush2.msra.mxu0 0.0
    %195 = vmatprep.subr.mxu0 0.0
    %196 = vmatpush2.msra.mxu0 0.0
    %197 = vmatprep.subr.mxu0 0.0
    %198 = vmatpush2.msra.mxu0 0.0
    %199 = vmatprep.subr.mxu0 0.0
    %200 = vmatpush2.msra.mxu0 0.0
    %201 = vmatprep.subr.mxu0 0.0
    %202 = vmatpush2.msra.mxu0 0.0
    %203 = vmatprep.subr.mxu0 0.0
    %204 = vmatpush2.msra.mxu0 0.0
    %205 = vmatprep.subr.mxu0 0.0
    %206 = vmatpush2.msra.mxu0 0.0
    %207 = vmatprep.subr.mxu0 0.0
    %208 = vmatpush2.msra.mxu0 0.0
    %209 = vmatprep.subr.mxu0 0.0
    %210 = vmatpush2.msra.mxu0 0.0
    %211 = vmatprep.subr.mxu0 0.0
    %212 = vmatpush2.msra.mxu0 0.0
    %213 = vmatprep.subr.mxu0 0.0
    %214 = vmatpush2.msra.mxu0 0.0
    %215 = vmatprep.subr.mxu0 0.0
    %216 = vmatpush2.msra.mxu0 0.0
    %217 = vmatprep.subr.mxu0 0.0
    %218 = vmatpush2.msra.mxu0 0.0
    %219 = vmatprep.subr.mxu0 0.0
    %220 = vmatpush2.msra.mxu0 0.0
    %221 = vmatprep.mubr.f32.mxu0 0.0
    %222 = vmatmul.mubr.f32.gmra.mxu0 %v152
    %v223 = vpop.f32.mrf.mxu0
    %v224 = vadd.f32 %v156, %v223
    %v225 = vpop.f32.mrf.mxu0
    %226 = vdwg.mxu0
    %v227 = vmax.f32 %v224, 0.0
    %v228 = vlaneseq
    %v229 = vshrl.u32 %v228, 7
    %v230 = vsub.s32 0, %v229
    %v231 = vrot.slane %v72, %v230
    %232 = vmatprep.subr.mxu0 0.0
    %233 = vmatpush1.msra.mxu0 %v69
    %234 = vmatprep.subr.mxu0 0.0
    %235 = vmatpush1.msra.mxu0 %v68
    %236 = vmatprep.subr.mxu0 0.0
    %237 = vmatpush1.msra.mxu0 %v67
    %238 = vmatprep.subr.mxu0 0.0
    %239 = vmatpush1.msra.mxu0 %v66
    %240 = vmatprep.subr.mxu0 0.0
    %241 = vmatpush1.msra.mxu0 %v65
    %242 = vmatprep.subr.mxu0 0.0
    %243 = vmatpush1.msra.mxu0 %v64
    %244 = vmatprep.subr.mxu0 0.0
    %245 = vmatpush1.msra.mxu0 %v63
    %246 = vmatprep.subr.mxu0 0.0
    %247 = vmatpush1.msra.mxu0 %v62
    %248 = vmatprep.subr.mxu0 0.0
    %249 = vmatpush1.msra.mxu0 %v61
    %250 = vmatprep.subr.mxu0 0.0
    %251 = vmatpush1.msra.mxu0 %v60
    %252 = vmatprep.subr.mxu0 0.0
    %253 = vmatpush1.msra.mxu0 %v59
    %254 = vmatprep.subr.mxu0 0.0
    %255 = vmatpush1.msra.mxu0 %v58
    %256 = vmatprep.subr.mxu0 0.0
    %257 = vmatpush1.msra.mxu0 %v57
    %258 = vmatprep.subr.mxu0 0.0
    %259 = vmatpush1.msra.mxu0 %v56
    %260 = vmatprep.subr.mxu0 0.0
    %261 = vmatpush1.msra.mxu0 %v55
    %262 = vmatprep.subr.mxu0 0.0
    %263 = vmatpush1.msra.mxu0 %v54
    %264 = vmatprep.subr.mxu0 0.0
    %265 = vmatpush2.msra.mxu0 0.0
    %266 = vmatprep.subr.mxu0 0.0
    %267 = vmatpush2.msra.mxu0 0.0
    %268 = vmatprep.subr.mxu0 0.0
    %269 = vmatpush2.msra.mxu0 0.0
    %270 = vmatprep.subr.mxu0 0.0
    %271 = vmatpush2.msra.mxu0 0.0
    %272 = vmatprep.subr.mxu0 0.0
    %273 = vmatpush2.msra.mxu0 0.0
    %274 = vmatprep.subr.mxu0 0.0
    %275 = vmatpush2.msra.mxu0 0.0
    %276 = vmatprep.subr.mxu0 0.0
    %277 = vmatpush2.msra.mxu0 0.0
    %278 = vmatprep.subr.mxu0 0.0
    %279 = vmatpush2.msra.mxu0 0.0
    %280 = vmatprep.subr.mxu0 0.0
    %281 = vmatpush2.msra.mxu0 0.0
    %282 = vmatprep.subr.mxu0 0.0
    %283 = vmatpush2.msra.mxu0 0.0
    %284 = vmatprep.subr.mxu0 0.0
    %285 = vmatpush2.msra.mxu0 0.0
    %286 = vmatprep.subr.mxu0 0.0
    %287 = vmatpush2.msra.mxu0 0.0
    %288 = vmatprep.subr.mxu0 0.0
    %289 = vmatpush2.msra.mxu0 0.0
    %290 = vmatprep.subr.mxu0 0.0
    %291 = vmatpush2.msra.mxu0 0.0
    %292 = vmatprep.subr.mxu0 0.0
    %293 = vmatpush2.msra.mxu0 0.0
    %294 = vmatprep.subr.mxu0 0.0
    %295 = vmatpush2.msra.mxu0 0.0
    %296 = vmatprep.mubr.f32.mxu0 0.0
    %297 = vmatmul.mubr.f32.gmra.mxu0 %v227
    %v298 = vpop.f32.mrf.mxu0
    %v299 = vadd.f32 %v231, %v298
    %v300 = vpop.f32.mrf.mxu0
    %301 = vdwg.mxu0
    %vm302 = vcmask 31744
    %303 = vst.msk [vmem:[%s2] sm:$0xff] %vm302, %v299
    // Predicated region
    $region18: #{tpu_custom_call.1} parent=1 // pred_check
      _
    $region19: #{tpu_custom_call.1} parent=1 // pred_check_branch
      %305 = sbr.rel (0) target = $region21
    $region20: #{tpu_custom_call.1} parent=1 // pred_region
      _
    $region21: #{tpu_custom_call.1} parent=1 // pred_fallthru
      _
    // Predicated region
    $region22: #{tpu_custom_call.1} parent=1 // pred_check
      _
    $region23: #{tpu_custom_call.1} parent=1 // pred_check_branch
      %307 = sbr.rel (0) target = $region25
    $region24: #{tpu_custom_call.1} parent=1 // pred_region
      _
    $region25: #{tpu_custom_call.1} parent=1 // pred_fallthru
      _
    %308 = vsyncpa [#allocation3], 1
    %309 = vsyncpa [#allocation5], 1

</llo_original>
